<compile_context>
chip_gen: v5e
topology: v5e:2x2
jax: 0.10.0
libtpu: 0.0.40
codegen_flags: <defaults>
</compile_context>

<pallas_src>
import math
from functools import partial

import jax
import jax.numpy as jnp
from jax import lax
from jax.experimental import pallas as pl
from jax.experimental.pallas import tpu as pltpu


# ----------------------------- fused Pallas kernel --------------------------

def _fused_self_attention_kernel(x_ref, wqkv_ref, wproj_ref, bias_ref, o_ref,
                                 *, B, N, C, H, Dh, scale):
    """x:(B*N,C)  wqkv:(C,3C)  wproj:(C,C)  bias:(H,N,N)  o:(B*N,C)."""
    x = x_ref[...]
    wqkv = wqkv_ref[...]
    wproj = wproj_ref[...]

    # qkv linear on the MXU; output columns are laid out [q | k | v],
    # each block of C columns split per head into Dh-wide slices.
    qkv = jnp.dot(x, wqkv, preferred_element_type=jnp.float32)        # (B*N, 3C)

    # Contract the last dims of q and k directly (no explicit K transpose).
    contract_last = (((1,), (1,)), ((), ()))

    for b in range(B):                      # B*H = 8 tiny static iterations
        r0, r1 = b * N, (b + 1) * N
        acc = jnp.zeros((N, C), jnp.float32)  # projected output for batch b
        for h in range(H):
            c0 = h * Dh
            q = qkv[r0:r1, c0:c0 + Dh]                        # (N, Dh)
            k = qkv[r0:r1, C + c0:C + c0 + Dh]                # (N, Dh)
            v = qkv[r0:r1, 2 * C + c0:2 * C + c0 + Dh]        # (N, Dh)

            s = lax.dot_general(q, k, contract_last,
                                preferred_element_type=jnp.float32) * scale
            s = s - jnp.max(s, axis=-1, keepdims=True)
            p = jnp.exp(s)
            p = p * pl.reciprocal(jnp.sum(p, axis=-1, keepdims=True),
                                  approx=True)
            ctx = jnp.dot(p, v, preferred_element_type=jnp.float32)   # (N, Dh)

            # Reproduce the module's `x = x + position_bias` (needs Dh == N).
            ctx = ctx + bias_ref[h]

            # Head h's contribution to the output projection:
            #   out[b] += ctx_bh @ W_proj^T[h*Dh:(h+1)*Dh, :]
            acc = acc + jnp.dot(ctx, wproj[c0:c0 + Dh, :],
                                preferred_element_type=jnp.float32)
        o_ref[r0:r1, :] = acc.astype(o_ref.dtype)


def fused_self_attention(x2d, wqkv_t, wproj_t, pos_bias, *, B, N, C, H, Dh):
    """x2d:(B*N,C) @ wqkv_t:(C,3C) -> attention(+bias) -> @ wproj_t:(C,C)."""
    scale = 1.0 / math.sqrt(Dh)
    kernel = partial(_fused_self_attention_kernel,
                     B=B, N=N, C=C, H=H, Dh=Dh, scale=scale)
    vmem = pl.BlockSpec(memory_space=pltpu.MemorySpace.VMEM)
    return pl.pallas_call(
        kernel,
        out_shape=jax.ShapeDtypeStruct((B * N, C), x2d.dtype),
        # No grid: whole working set fits in VMEM for a single invocation.
        in_specs=[vmem, vmem, vmem, vmem],
        out_specs=vmem,
    )(x2d, wqkv_t, wproj_t, pos_bias)


# --------------------- relative position bias (JAX glue) -------------------

def relative_position_bucket(relative_position, num_buckets=32, max_distance=128):
    relative_buckets = jnp.zeros_like(relative_position)
    num_buckets = num_buckets // 2
    relative_buckets = relative_buckets + (
        (relative_position > 0).astype(jnp.int32) * num_buckets)
    relative_position = jnp.abs(relative_position)
    max_exact = num_buckets // 2
    is_small = relative_position < max_exact
    # Clamp to >= 1 before the log: rel_pos == 0 would give -inf and an
    # undefined float->int cast (the value is masked by is_small anyway).
    safe_rp = jnp.maximum(relative_position, 1).astype(jnp.float32)
    rp_if_large = jnp.log(safe_rp / max_exact) / math.log(max_distance / max_exact)
    rp_if_large = max_exact + (rp_if_large * (num_buckets - max_exact)).astype(jnp.int32)
    rp_if_large = jnp.minimum(rp_if_large,
                              jnp.full_like(rp_if_large, num_buckets - 1))
    relative_buckets = relative_buckets + jnp.where(
        is_small, relative_position, rp_if_large)
    return relative_buckets


def compute_bias(bias_table, query_length, key_length):
    # bias_table: (num_buckets, H) -> (1, H, q, k); tiny int gather stays in JAX.
    context_position = jnp.arange(query_length, dtype=jnp.int32)[:, None]
    memory_position = jnp.arange(key_length, dtype=jnp.int32)[None, :]
    relative_position = memory_position - context_position
    buckets = relative_position_bucket(relative_position)
    values = bias_table[buckets]                       # (q, k, H) embedding gather
    values = jnp.transpose(values, (2, 0, 1))[None]    # (1, H, q, k)
    return values


# ------------------------------- forward -----------------------------------

def self_attention_forward(hidden_states, w_qkv, w_proj, rel_bias, num_heads):
    """hidden_states: (B, N, C); w_qkv: (3C, C); w_proj: (C, C); rel_bias: (32, H)."""
    B, N, C = hidden_states.shape
    H = num_heads
    Dh = C // H
    assert Dh == N, "module's `x + position_bias` broadcast requires head_dim == seq_len"

    # TODO(synk): attn_mask / dropout paths not implemented (defaults None / 0.0).
    pos_bias = compute_bias(rel_bias, N, N)[0]          # (H, N, N)
    out2d = fused_self_attention(
        hidden_states.reshape(B * N, C), w_qkv.T, w_proj.T, pos_bias,
        B=B, N=N, C=C, H=H, Dh=Dh)                      # (B*N, C)
    return out2d.reshape(B, N, C)


def reference_forward(hidden_states, w_qkv, w_proj, rel_bias, num_heads):
    B, N, C = hidden_states.shape
    H = num_heads
    Dh = C // H
    hp = jax.lax.Precision.HIGHEST
    qkv = jnp.einsum("bnc,dc->bnd", hidden_states, w_qkv, precision=hp)
    qkv = qkv.reshape(B, N, 3, H, Dh).transpose(2, 0, 3, 1, 4)
    q, k, v = qkv[0], qkv[1], qkv[2]
    s = jnp.einsum("bhqd,bhkd->bhqk", q, k, precision=hp) / math.sqrt(Dh)
    p = jax.nn.softmax(s, axis=-1)
    x = jnp.einsum("bhqk,bhkd->bhqd", p, v, precision=hp)
    x = x + compute_bias(rel_bias, N, N)
    x = x.transpose(0, 2, 1, 3).reshape(B, N, C)
    return jnp.einsum("bnc,dc->bnd", x, w_proj, precision=hp)


# --------------------------------- main -------------------------------------

if __name__ == "__main__":
    B, N, embed_dim, num_heads = 2, 8, 32, 4   # head_dim = 8 == N (see note above)
    num_buckets = 32

    key = jax.random.PRNGKey(0)
    k_x, k_qkv, k_proj, k_bias = jax.random.split(key, 4)

    hidden_states = jax.random.normal(k_x, (B, N, embed_dim), dtype=jnp.float32)
    # Deterministic synthetic parameters (shapes from the module's __init__).
    w_qkv = 0.1 * jax.random.normal(k_qkv, (3 * embed_dim, embed_dim), jnp.float32)
    w_proj = 0.1 * jax.random.normal(k_proj, (embed_dim, embed_dim), jnp.float32)
    rel_bias = 0.1 * jax.random.normal(k_bias, (num_buckets, num_heads), jnp.float32)

    out = self_attention_forward(hidden_states, w_qkv, w_proj, rel_bias, num_heads)
    out = jax.block_until_ready(out)

    ref = reference_forward(hidden_states, w_qkv, w_proj, rel_bias, num_heads)
    assert out.shape == (B, N, embed_dim)
    assert jnp.allclose(out, ref, atol=2e-3, rtol=2e-3), "mismatch vs JAX reference"

    print("KERNEL_OK")
</pallas_src>

<mosaic_0001>
module attributes {stable_mosaic.version = 11 : i64} {
  func.func @_fused_self_attention_kernel(%arg0: memref<16x32xf32, #tpu.memory_space<vmem>>, %arg1: memref<32x96xf32, #tpu.memory_space<vmem>>, %arg2: memref<32x32xf32, #tpu.memory_space<vmem>>, %arg3: memref<4x8x8xf32, #tpu.memory_space<vmem>>, %arg4: memref<16x32xf32, #tpu.memory_space<vmem>>) attributes {dimension_semantics = [], scalar_prefetch = 0 : i64, scratch_operands = 0 : i64, tpu.core_type = #tpu.core_type<tc>} {
    %c0 = arith.constant 0 : index
    %c0_0 = arith.constant 0 : index
    %0 = vector.load %arg0[%c0, %c0_0] : memref<16x32xf32, #tpu.memory_space<vmem>>, vector<16x32xf32>
    %c0_1 = arith.constant 0 : index
    %c0_2 = arith.constant 0 : index
    %1 = vector.load %arg1[%c0_1, %c0_2] : memref<32x96xf32, #tpu.memory_space<vmem>>, vector<32x96xf32>
    %c0_3 = arith.constant 0 : index
    %c0_4 = arith.constant 0 : index
    %2 = vector.load %arg2[%c0_3, %c0_4] : memref<32x32xf32, #tpu.memory_space<vmem>>, vector<32x32xf32>
    %cst = arith.constant dense<0.000000e+00> : vector<16x96xf32>
    %3 = tpu.matmul %0, %1, %cst {dimension_numbers = #tpu.dot_dimension_numbers<[1], [0], [0], [1], [0, 0, 1, 1], [], []>} : vector<16x32xf32>, vector<32x96xf32>, vector<16x96xf32> -> vector<16x96xf32>
    %cst_5 = arith.constant 0.000000e+00 : f32
    %4 = vector.broadcast %cst_5 : f32 to vector<8x32xf32>
    %5 = vector.extract_strided_slice %3 {offsets = [0, 0], sizes = [8, 8], strides = [1, 1]} : vector<16x96xf32> to vector<8x8xf32>
    %6 = vector.extract_strided_slice %3 {offsets = [0, 32], sizes = [8, 8], strides = [1, 1]} : vector<16x96xf32> to vector<8x8xf32>
    %7 = vector.extract_strided_slice %3 {offsets = [0, 64], sizes = [8, 8], strides = [1, 1]} : vector<16x96xf32> to vector<8x8xf32>
    %cst_6 = arith.constant dense<0.000000e+00> : vector<8x8xf32>
    %8 = tpu.matmul %5, %6, %cst_6 {dimension_numbers = #tpu.dot_dimension_numbers<[1], [1], [0], [0], [0, 0, 1, 0], [], []>} : vector<8x8xf32>, vector<8x8xf32>, vector<8x8xf32> -> vector<8x8xf32>
    %cst_7 = arith.constant 0.353553385 : f32
    %9 = vector.broadcast %cst_7 : f32 to vector<8x8xf32>
    %10 = arith.mulf %8, %9 : vector<8x8xf32>
    %cst_8 = arith.constant dense<0xFF800000> : vector<8xf32>
    %11 = vector.multi_reduction <maximumf>, %10, %cst_8 [1] : vector<8x8xf32> to vector<8xf32>
    %12 = vector.shape_cast %11 : vector<8xf32> to vector<8x1xf32>
    %13 = vector.broadcast %12 : vector<8x1xf32> to vector<8x8xf32>
    %14 = arith.subf %10, %13 : vector<8x8xf32>
    %15 = math.exp %14 : vector<8x8xf32>
    %cst_9 = arith.constant dense<0.000000e+00> : vector<8xf32>
    %16 = vector.multi_reduction <add>, %15, %cst_9 [1] : vector<8x8xf32> to vector<8xf32>
    %17 = vector.shape_cast %16 : vector<8xf32> to vector<8x1xf32>
    %18 = tpu.reciprocal %17 {approx = true} : vector<8x1xf32> -> vector<8x1xf32>
    %19 = vector.broadcast %18 : vector<8x1xf32> to vector<8x8xf32>
    %20 = arith.mulf %15, %19 : vector<8x8xf32>
    %cst_10 = arith.constant dense<0.000000e+00> : vector<8x8xf32>
    %21 = tpu.matmul %20, %7, %cst_10 {dimension_numbers = #tpu.dot_dimension_numbers<[1], [0], [0], [1], [0, 0, 1, 1], [], []>} : vector<8x8xf32>, vector<8x8xf32>, vector<8x8xf32> -> vector<8x8xf32>
    %c0_11 = arith.constant 0 : index
    %c0_12 = arith.constant 0 : index
    %c0_13 = arith.constant 0 : index
    %22 = vector.load %arg3[%c0_11, %c0_12, %c0_13] : memref<4x8x8xf32, #tpu.memory_space<vmem>>, vector<1x8x8xf32>
    %23 = vector.shape_cast %22 : vector<1x8x8xf32> to vector<8x8xf32>
    %24 = arith.addf %21, %23 : vector<8x8xf32>
    %25 = vector.extract_strided_slice %2 {offsets = [0, 0], sizes = [8, 32], strides = [1, 1]} : vector<32x32xf32> to vector<8x32xf32>
    %cst_14 = arith.constant dense<0.000000e+00> : vector<8x32xf32>
    %26 = tpu.matmul %24, %25, %cst_14 {dimension_numbers = #tpu.dot_dimension_numbers<[1], [0], [0], [1], [0, 0, 1, 1], [], []>} : vector<8x8xf32>, vector<8x32xf32>, vector<8x32xf32> -> vector<8x32xf32>
    %27 = arith.addf %4, %26 : vector<8x32xf32>
    %28 = vector.extract_strided_slice %3 {offsets = [0, 8], sizes = [8, 8], strides = [1, 1]} : vector<16x96xf32> to vector<8x8xf32>
    %29 = vector.extract_strided_slice %3 {offsets = [0, 40], sizes = [8, 8], strides = [1, 1]} : vector<16x96xf32> to vector<8x8xf32>
    %30 = vector.extract_strided_slice %3 {offsets = [0, 72], sizes = [8, 8], strides = [1, 1]} : vector<16x96xf32> to vector<8x8xf32>
    %cst_15 = arith.constant dense<0.000000e+00> : vector<8x8xf32>
    %31 = tpu.matmul %28, %29, %cst_15 {dimension_numbers = #tpu.dot_dimension_numbers<[1], [1], [0], [0], [0, 0, 1, 0], [], []>} : vector<8x8xf32>, vector<8x8xf32>, vector<8x8xf32> -> vector<8x8xf32>
    %cst_16 = arith.constant 0.353553385 : f32
    %32 = vector.broadcast %cst_16 : f32 to vector<8x8xf32>
    %33 = arith.mulf %31, %32 : vector<8x8xf32>
    %cst_17 = arith.constant dense<0xFF800000> : vector<8xf32>
    %34 = vector.multi_reduction <maximumf>, %33, %cst_17 [1] : vector<8x8xf32> to vector<8xf32>
    %35 = vector.shape_cast %34 : vector<8xf32> to vector<8x1xf32>
    %36 = vector.broadcast %35 : vector<8x1xf32> to vector<8x8xf32>
    %37 = arith.subf %33, %36 : vector<8x8xf32>
    %38 = math.exp %37 : vector<8x8xf32>
    %cst_18 = arith.constant dense<0.000000e+00> : vector<8xf32>
    %39 = vector.multi_reduction <add>, %38, %cst_18 [1] : vector<8x8xf32> to vector<8xf32>
    %40 = vector.shape_cast %39 : vector<8xf32> to vector<8x1xf32>
    %41 = tpu.reciprocal %40 {approx = true} : vector<8x1xf32> -> vector<8x1xf32>
    %42 = vector.broadcast %41 : vector<8x1xf32> to vector<8x8xf32>
    %43 = arith.mulf %38, %42 : vector<8x8xf32>
    %cst_19 = arith.constant dense<0.000000e+00> : vector<8x8xf32>
    %44 = tpu.matmul %43, %30, %cst_19 {dimension_numbers = #tpu.dot_dimension_numbers<[1], [0], [0], [1], [0, 0, 1, 1], [], []>} : vector<8x8xf32>, vector<8x8xf32>, vector<8x8xf32> -> vector<8x8xf32>
    %c1 = arith.constant 1 : index
    %c0_20 = arith.constant 0 : index
    %c0_21 = arith.constant 0 : index
    %45 = vector.load %arg3[%c1, %c0_20, %c0_21] : memref<4x8x8xf32, #tpu.memory_space<vmem>>, vector<1x8x8xf32>
    %46 = vector.shape_cast %45 : vector<1x8x8xf32> to vector<8x8xf32>
    %47 = arith.addf %44, %46 : vector<8x8xf32>
    %48 = vector.extract_strided_slice %2 {offsets = [8, 0], sizes = [8, 32], strides = [1, 1]} : vector<32x32xf32> to vector<8x32xf32>
    %cst_22 = arith.constant dense<0.000000e+00> : vector<8x32xf32>
    %49 = tpu.matmul %47, %48, %cst_22 {dimension_numbers = #tpu.dot_dimension_numbers<[1], [0], [0], [1], [0, 0, 1, 1], [], []>} : vector<8x8xf32>, vector<8x32xf32>, vector<8x32xf32> -> vector<8x32xf32>
    %50 = arith.addf %27, %49 : vector<8x32xf32>
    %51 = vector.extract_strided_slice %3 {offsets = [0, 16], sizes = [8, 8], strides = [1, 1]} : vector<16x96xf32> to vector<8x8xf32>
    %52 = vector.extract_strided_slice %3 {offsets = [0, 48], sizes = [8, 8], strides = [1, 1]} : vector<16x96xf32> to vector<8x8xf32>
    %53 = vector.extract_strided_slice %3 {offsets = [0, 80], sizes = [8, 8], strides = [1, 1]} : vector<16x96xf32> to vector<8x8xf32>
    %cst_23 = arith.constant dense<0.000000e+00> : vector<8x8xf32>
    %54 = tpu.matmul %51, %52, %cst_23 {dimension_numbers = #tpu.dot_dimension_numbers<[1], [1], [0], [0], [0, 0, 1, 0], [], []>} : vector<8x8xf32>, vector<8x8xf32>, vector<8x8xf32> -> vector<8x8xf32>
    %cst_24 = arith.constant 0.353553385 : f32
    %55 = vector.broadcast %cst_24 : f32 to vector<8x8xf32>
    %56 = arith.mulf %54, %55 : vector<8x8xf32>
    %cst_25 = arith.constant dense<0xFF800000> : vector<8xf32>
    %57 = vector.multi_reduction <maximumf>, %56, %cst_25 [1] : vector<8x8xf32> to vector<8xf32>
    %58 = vector.shape_cast %57 : vector<8xf32> to vector<8x1xf32>
    %59 = vector.broadcast %58 : vector<8x1xf32> to vector<8x8xf32>
    %60 = arith.subf %56, %59 : vector<8x8xf32>
    %61 = math.exp %60 : vector<8x8xf32>
    %cst_26 = arith.constant dense<0.000000e+00> : vector<8xf32>
    %62 = vector.multi_reduction <add>, %61, %cst_26 [1] : vector<8x8xf32> to vector<8xf32>
    %63 = vector.shape_cast %62 : vector<8xf32> to vector<8x1xf32>
    %64 = tpu.reciprocal %63 {approx = true} : vector<8x1xf32> -> vector<8x1xf32>
    %65 = vector.broadcast %64 : vector<8x1xf32> to vector<8x8xf32>
    %66 = arith.mulf %61, %65 : vector<8x8xf32>
    %cst_27 = arith.constant dense<0.000000e+00> : vector<8x8xf32>
    %67 = tpu.matmul %66, %53, %cst_27 {dimension_numbers = #tpu.dot_dimension_numbers<[1], [0], [0], [1], [0, 0, 1, 1], [], []>} : vector<8x8xf32>, vector<8x8xf32>, vector<8x8xf32> -> vector<8x8xf32>
    %c2 = arith.constant 2 : index
    %c0_28 = arith.constant 0 : index
    %c0_29 = arith.constant 0 : index
    %68 = vector.load %arg3[%c2, %c0_28, %c0_29] : memref<4x8x8xf32, #tpu.memory_space<vmem>>, vector<1x8x8xf32>
    %69 = vector.shape_cast %68 : vector<1x8x8xf32> to vector<8x8xf32>
    %70 = arith.addf %67, %69 : vector<8x8xf32>
    %71 = vector.extract_strided_slice %2 {offsets = [16, 0], sizes = [8, 32], strides = [1, 1]} : vector<32x32xf32> to vector<8x32xf32>
    %cst_30 = arith.constant dense<0.000000e+00> : vector<8x32xf32>
    %72 = tpu.matmul %70, %71, %cst_30 {dimension_numbers = #tpu.dot_dimension_numbers<[1], [0], [0], [1], [0, 0, 1, 1], [], []>} : vector<8x8xf32>, vector<8x32xf32>, vector<8x32xf32> -> vector<8x32xf32>
    %73 = arith.addf %50, %72 : vector<8x32xf32>
    %74 = vector.extract_strided_slice %3 {offsets = [0, 24], sizes = [8, 8], strides = [1, 1]} : vector<16x96xf32> to vector<8x8xf32>
    %75 = vector.extract_strided_slice %3 {offsets = [0, 56], sizes = [8, 8], strides = [1, 1]} : vector<16x96xf32> to vector<8x8xf32>
    %76 = vector.extract_strided_slice %3 {offsets = [0, 88], sizes = [8, 8], strides = [1, 1]} : vector<16x96xf32> to vector<8x8xf32>
    %cst_31 = arith.constant dense<0.000000e+00> : vector<8x8xf32>
    %77 = tpu.matmul %74, %75, %cst_31 {dimension_numbers = #tpu.dot_dimension_numbers<[1], [1], [0], [0], [0, 0, 1, 0], [], []>} : vector<8x8xf32>, vector<8x8xf32>, vector<8x8xf32> -> vector<8x8xf32>
    %cst_32 = arith.constant 0.353553385 : f32
    %78 = vector.broadcast %cst_32 : f32 to vector<8x8xf32>
    %79 = arith.mulf %77, %78 : vector<8x8xf32>
    %cst_33 = arith.constant dense<0xFF800000> : vector<8xf32>
    %80 = vector.multi_reduction <maximumf>, %79, %cst_33 [1] : vector<8x8xf32> to vector<8xf32>
    %81 = vector.shape_cast %80 : vector<8xf32> to vector<8x1xf32>
    %82 = vector.broadcast %81 : vector<8x1xf32> to vector<8x8xf32>
    %83 = arith.subf %79, %82 : vector<8x8xf32>
    %84 = math.exp %83 : vector<8x8xf32>
    %cst_34 = arith.constant dense<0.000000e+00> : vector<8xf32>
    %85 = vector.multi_reduction <add>, %84, %cst_34 [1] : vector<8x8xf32> to vector<8xf32>
    %86 = vector.shape_cast %85 : vector<8xf32> to vector<8x1xf32>
    %87 = tpu.reciprocal %86 {approx = true} : vector<8x1xf32> -> vector<8x1xf32>
    %88 = vector.broadcast %87 : vector<8x1xf32> to vector<8x8xf32>
    %89 = arith.mulf %84, %88 : vector<8x8xf32>
    %cst_35 = arith.constant dense<0.000000e+00> : vector<8x8xf32>
    %90 = tpu.matmul %89, %76, %cst_35 {dimension_numbers = #tpu.dot_dimension_numbers<[1], [0], [0], [1], [0, 0, 1, 1], [], []>} : vector<8x8xf32>, vector<8x8xf32>, vector<8x8xf32> -> vector<8x8xf32>
    %c3 = arith.constant 3 : index
    %c0_36 = arith.constant 0 : index
    %c0_37 = arith.constant 0 : index
    %91 = vector.load %arg3[%c3, %c0_36, %c0_37] : memref<4x8x8xf32, #tpu.memory_space<vmem>>, vector<1x8x8xf32>
    %92 = vector.shape_cast %91 : vector<1x8x8xf32> to vector<8x8xf32>
    %93 = arith.addf %90, %92 : vector<8x8xf32>
    %94 = vector.extract_strided_slice %2 {offsets = [24, 0], sizes = [8, 32], strides = [1, 1]} : vector<32x32xf32> to vector<8x32xf32>
    %cst_38 = arith.constant dense<0.000000e+00> : vector<8x32xf32>
    %95 = tpu.matmul %93, %94, %cst_38 {dimension_numbers = #tpu.dot_dimension_numbers<[1], [0], [0], [1], [0, 0, 1, 1], [], []>} : vector<8x8xf32>, vector<8x32xf32>, vector<8x32xf32> -> vector<8x32xf32>
    %96 = arith.addf %73, %95 : vector<8x32xf32>
    %c0_39 = arith.constant 0 : index
    %c0_40 = arith.constant 0 : index
    %97 = vector.load %arg4[%c0_39, %c0_40] : memref<16x32xf32, #tpu.memory_space<vmem>>, vector<8x32xf32>
    tpu.vector_store %arg4[%c0_39, %c0_40], %96 {strides = array<i32>} : memref<16x32xf32, #tpu.memory_space<vmem>>, vector<8x32xf32>,
    %cst_41 = arith.constant 0.000000e+00 : f32
    %98 = vector.broadcast %cst_41 : f32 to vector<8x32xf32>
    %99 = vector.extract_strided_slice %3 {offsets = [8, 0], sizes = [8, 8], strides = [1, 1]} : vector<16x96xf32> to vector<8x8xf32>
    %100 = vector.extract_strided_slice %3 {offsets = [8, 32], sizes = [8, 8], strides = [1, 1]} : vector<16x96xf32> to vector<8x8xf32>
    %101 = vector.extract_strided_slice %3 {offsets = [8, 64], sizes = [8, 8], strides = [1, 1]} : vector<16x96xf32> to vector<8x8xf32>
    %cst_42 = arith.constant dense<0.000000e+00> : vector<8x8xf32>
    %102 = tpu.matmul %99, %100, %cst_42 {dimension_numbers = #tpu.dot_dimension_numbers<[1], [1], [0], [0], [0, 0, 1, 0], [], []>} : vector<8x8xf32>, vector<8x8xf32>, vector<8x8xf32> -> vector<8x8xf32>
    %cst_43 = arith.constant 0.353553385 : f32
    %103 = vector.broadcast %cst_43 : f32 to vector<8x8xf32>
    %104 = arith.mulf %102, %103 : vector<8x8xf32>
    %cst_44 = arith.constant dense<0xFF800000> : vector<8xf32>
    %105 = vector.multi_reduction <maximumf>, %104, %cst_44 [1] : vector<8x8xf32> to vector<8xf32>
    %106 = vector.shape_cast %105 : vector<8xf32> to vector<8x1xf32>
    %107 = vector.broadcast %106 : vector<8x1xf32> to vector<8x8xf32>
    %108 = arith.subf %104, %107 : vector<8x8xf32>
    %109 = math.exp %108 : vector<8x8xf32>
    %cst_45 = arith.constant dense<0.000000e+00> : vector<8xf32>
    %110 = vector.multi_reduction <add>, %109, %cst_45 [1] : vector<8x8xf32> to vector<8xf32>
    %111 = vector.shape_cast %110 : vector<8xf32> to vector<8x1xf32>
    %112 = tpu.reciprocal %111 {approx = true} : vector<8x1xf32> -> vector<8x1xf32>
    %113 = vector.broadcast %112 : vector<8x1xf32> to vector<8x8xf32>
    %114 = arith.mulf %109, %113 : vector<8x8xf32>
    %cst_46 = arith.constant dense<0.000000e+00> : vector<8x8xf32>
    %115 = tpu.matmul %114, %101, %cst_46 {dimension_numbers = #tpu.dot_dimension_numbers<[1], [0], [0], [1], [0, 0, 1, 1], [], []>} : vector<8x8xf32>, vector<8x8xf32>, vector<8x8xf32> -> vector<8x8xf32>
    %c0_47 = arith.constant 0 : index
    %c0_48 = arith.constant 0 : index
    %c0_49 = arith.constant 0 : index
    %116 = vector.load %arg3[%c0_47, %c0_48, %c0_49] : memref<4x8x8xf32, #tpu.memory_space<vmem>>, vector<1x8x8xf32>
    %117 = vector.shape_cast %116 : vector<1x8x8xf32> to vector<8x8xf32>
    %118 = arith.addf %115, %117 : vector<8x8xf32>
    %119 = vector.extract_strided_slice %2 {offsets = [0, 0], sizes = [8, 32], strides = [1, 1]} : vector<32x32xf32> to vector<8x32xf32>
    %cst_50 = arith.constant dense<0.000000e+00> : vector<8x32xf32>
    %120 = tpu.matmul %118, %119, %cst_50 {dimension_numbers = #tpu.dot_dimension_numbers<[1], [0], [0], [1], [0, 0, 1, 1], [], []>} : vector<8x8xf32>, vector<8x32xf32>, vector<8x32xf32> -> vector<8x32xf32>
    %121 = arith.addf %98, %120 : vector<8x32xf32>
    %122 = vector.extract_strided_slice %3 {offsets = [8, 8], sizes = [8, 8], strides = [1, 1]} : vector<16x96xf32> to vector<8x8xf32>
    %123 = vector.extract_strided_slice %3 {offsets = [8, 40], sizes = [8, 8], strides = [1, 1]} : vector<16x96xf32> to vector<8x8xf32>
    %124 = vector.extract_strided_slice %3 {offsets = [8, 72], sizes = [8, 8], strides = [1, 1]} : vector<16x96xf32> to vector<8x8xf32>
    %cst_51 = arith.constant dense<0.000000e+00> : vector<8x8xf32>
    %125 = tpu.matmul %122, %123, %cst_51 {dimension_numbers = #tpu.dot_dimension_numbers<[1], [1], [0], [0], [0, 0, 1, 0], [], []>} : vector<8x8xf32>, vector<8x8xf32>, vector<8x8xf32> -> vector<8x8xf32>
    %cst_52 = arith.constant 0.353553385 : f32
    %126 = vector.broadcast %cst_52 : f32 to vector<8x8xf32>
    %127 = arith.mulf %125, %126 : vector<8x8xf32>
    %cst_53 = arith.constant dense<0xFF800000> : vector<8xf32>
    %128 = vector.multi_reduction <maximumf>, %127, %cst_53 [1] : vector<8x8xf32> to vector<8xf32>
    %129 = vector.shape_cast %128 : vector<8xf32> to vector<8x1xf32>
    %130 = vector.broadcast %129 : vector<8x1xf32> to vector<8x8xf32>
    %131 = arith.subf %127, %130 : vector<8x8xf32>
    %132 = math.exp %131 : vector<8x8xf32>
    %cst_54 = arith.constant dense<0.000000e+00> : vector<8xf32>
    %133 = vector.multi_reduction <add>, %132, %cst_54 [1] : vector<8x8xf32> to vector<8xf32>
    %134 = vector.shape_cast %133 : vector<8xf32> to vector<8x1xf32>
    %135 = tpu.reciprocal %134 {approx = true} : vector<8x1xf32> -> vector<8x1xf32>
    %136 = vector.broadcast %135 : vector<8x1xf32> to vector<8x8xf32>
    %137 = arith.mulf %132, %136 : vector<8x8xf32>
    %cst_55 = arith.constant dense<0.000000e+00> : vector<8x8xf32>
    %138 = tpu.matmul %137, %124, %cst_55 {dimension_numbers = #tpu.dot_dimension_numbers<[1], [0], [0], [1], [0, 0, 1, 1], [], []>} : vector<8x8xf32>, vector<8x8xf32>, vector<8x8xf32> -> vector<8x8xf32>
    %c1_56 = arith.constant 1 : index
    %c0_57 = arith.constant 0 : index
    %c0_58 = arith.constant 0 : index
    %139 = vector.load %arg3[%c1_56, %c0_57, %c0_58] : memref<4x8x8xf32, #tpu.memory_space<vmem>>, vector<1x8x8xf32>
    %140 = vector.shape_cast %139 : vector<1x8x8xf32> to vector<8x8xf32>
    %141 = arith.addf %138, %140 : vector<8x8xf32>
    %142 = vector.extract_strided_slice %2 {offsets = [8, 0], sizes = [8, 32], strides = [1, 1]} : vector<32x32xf32> to vector<8x32xf32>
    %cst_59 = arith.constant dense<0.000000e+00> : vector<8x32xf32>
    %143 = tpu.matmul %141, %142, %cst_59 {dimension_numbers = #tpu.dot_dimension_numbers<[1], [0], [0], [1], [0, 0, 1, 1], [], []>} : vector<8x8xf32>, vector<8x32xf32>, vector<8x32xf32> -> vector<8x32xf32>
    %144 = arith.addf %121, %143 : vector<8x32xf32>
    %145 = vector.extract_strided_slice %3 {offsets = [8, 16], sizes = [8, 8], strides = [1, 1]} : vector<16x96xf32> to vector<8x8xf32>
    %146 = vector.extract_strided_slice %3 {offsets = [8, 48], sizes = [8, 8], strides = [1, 1]} : vector<16x96xf32> to vector<8x8xf32>
    %147 = vector.extract_strided_slice %3 {offsets = [8, 80], sizes = [8, 8], strides = [1, 1]} : vector<16x96xf32> to vector<8x8xf32>
    %cst_60 = arith.constant dense<0.000000e+00> : vector<8x8xf32>
    %148 = tpu.matmul %145, %146, %cst_60 {dimension_numbers = #tpu.dot_dimension_numbers<[1], [1], [0], [0], [0, 0, 1, 0], [], []>} : vector<8x8xf32>, vector<8x8xf32>, vector<8x8xf32> -> vector<8x8xf32>
    %cst_61 = arith.constant 0.353553385 : f32
    %149 = vector.broadcast %cst_61 : f32 to vector<8x8xf32>
    %150 = arith.mulf %148, %149 : vector<8x8xf32>
    %cst_62 = arith.constant dense<0xFF800000> : vector<8xf32>
    %151 = vector.multi_reduction <maximumf>, %150, %cst_62 [1] : vector<8x8xf32> to vector<8xf32>
    %152 = vector.shape_cast %151 : vector<8xf32> to vector<8x1xf32>
    %153 = vector.broadcast %152 : vector<8x1xf32> to vector<8x8xf32>
    %154 = arith.subf %150, %153 : vector<8x8xf32>
    %155 = math.exp %154 : vector<8x8xf32>
    %cst_63 = arith.constant dense<0.000000e+00> : vector<8xf32>
    %156 = vector.multi_reduction <add>, %155, %cst_63 [1] : vector<8x8xf32> to vector<8xf32>
    %157 = vector.shape_cast %156 : vector<8xf32> to vector<8x1xf32>
    %158 = tpu.reciprocal %157 {approx = true} : vector<8x1xf32> -> vector<8x1xf32>
    %159 = vector.broadcast %158 : vector<8x1xf32> to vector<8x8xf32>
    %160 = arith.mulf %155, %159 : vector<8x8xf32>
    %cst_64 = arith.constant dense<0.000000e+00> : vector<8x8xf32>
    %161 = tpu.matmul %160, %147, %cst_64 {dimension_numbers = #tpu.dot_dimension_numbers<[1], [0], [0], [1], [0, 0, 1, 1], [], []>} : vector<8x8xf32>, vector<8x8xf32>, vector<8x8xf32> -> vector<8x8xf32>
    %c2_65 = arith.constant 2 : index
    %c0_66 = arith.constant 0 : index
    %c0_67 = arith.constant 0 : index
    %162 = vector.load %arg3[%c2_65, %c0_66, %c0_67] : memref<4x8x8xf32, #tpu.memory_space<vmem>>, vector<1x8x8xf32>
    %163 = vector.shape_cast %162 : vector<1x8x8xf32> to vector<8x8xf32>
    %164 = arith.addf %161, %163 : vector<8x8xf32>
    %165 = vector.extract_strided_slice %2 {offsets = [16, 0], sizes = [8, 32], strides = [1, 1]} : vector<32x32xf32> to vector<8x32xf32>
    %cst_68 = arith.constant dense<0.000000e+00> : vector<8x32xf32>
    %166 = tpu.matmul %164, %165, %cst_68 {dimension_numbers = #tpu.dot_dimension_numbers<[1], [0], [0], [1], [0, 0, 1, 1], [], []>} : vector<8x8xf32>, vector<8x32xf32>, vector<8x32xf32> -> vector<8x32xf32>
    %167 = arith.addf %144, %166 : vector<8x32xf32>
    %168 = vector.extract_strided_slice %3 {offsets = [8, 24], sizes = [8, 8], strides = [1, 1]} : vector<16x96xf32> to vector<8x8xf32>
    %169 = vector.extract_strided_slice %3 {offsets = [8, 56], sizes = [8, 8], strides = [1, 1]} : vector<16x96xf32> to vector<8x8xf32>
    %170 = vector.extract_strided_slice %3 {offsets = [8, 88], sizes = [8, 8], strides = [1, 1]} : vector<16x96xf32> to vector<8x8xf32>
    %cst_69 = arith.constant dense<0.000000e+00> : vector<8x8xf32>
    %171 = tpu.matmul %168, %169, %cst_69 {dimension_numbers = #tpu.dot_dimension_numbers<[1], [1], [0], [0], [0, 0, 1, 0], [], []>} : vector<8x8xf32>, vector<8x8xf32>, vector<8x8xf32> -> vector<8x8xf32>
    %cst_70 = arith.constant 0.353553385 : f32
    %172 = vector.broadcast %cst_70 : f32 to vector<8x8xf32>
    %173 = arith.mulf %171, %172 : vector<8x8xf32>
    %cst_71 = arith.constant dense<0xFF800000> : vector<8xf32>
    %174 = vector.multi_reduction <maximumf>, %173, %cst_71 [1] : vector<8x8xf32> to vector<8xf32>
    %175 = vector.shape_cast %174 : vector<8xf32> to vector<8x1xf32>
    %176 = vector.broadcast %175 : vector<8x1xf32> to vector<8x8xf32>
    %177 = arith.subf %173, %176 : vector<8x8xf32>
    %178 = math.exp %177 : vector<8x8xf32>
    %cst_72 = arith.constant dense<0.000000e+00> : vector<8xf32>
    %179 = vector.multi_reduction <add>, %178, %cst_72 [1] : vector<8x8xf32> to vector<8xf32>
    %180 = vector.shape_cast %179 : vector<8xf32> to vector<8x1xf32>
    %181 = tpu.reciprocal %180 {approx = true} : vector<8x1xf32> -> vector<8x1xf32>
    %182 = vector.broadcast %181 : vector<8x1xf32> to vector<8x8xf32>
    %183 = arith.mulf %178, %182 : vector<8x8xf32>
    %cst_73 = arith.constant dense<0.000000e+00> : vector<8x8xf32>
    %184 = tpu.matmul %183, %170, %cst_73 {dimension_numbers = #tpu.dot_dimension_numbers<[1], [0], [0], [1], [0, 0, 1, 1], [], []>} : vector<8x8xf32>, vector<8x8xf32>, vector<8x8xf32> -> vector<8x8xf32>
    %c3_74 = arith.constant 3 : index
    %c0_75 = arith.constant 0 : index
    %c0_76 = arith.constant 0 : index
    %185 = vector.load %arg3[%c3_74, %c0_75, %c0_76] : memref<4x8x8xf32, #tpu.memory_space<vmem>>, vector<1x8x8xf32>
    %186 = vector.shape_cast %185 : vector<1x8x8xf32> to vector<8x8xf32>
    %187 = arith.addf %184, %186 : vector<8x8xf32>
    %188 = vector.extract_strided_slice %2 {offsets = [24, 0], sizes = [8, 32], strides = [1, 1]} : vector<32x32xf32> to vector<8x32xf32>
    %cst_77 = arith.constant dense<0.000000e+00> : vector<8x32xf32>
    %189 = tpu.matmul %187, %188, %cst_77 {dimension_numbers = #tpu.dot_dimension_numbers<[1], [0], [0], [1], [0, 0, 1, 1], [], []>} : vector<8x8xf32>, vector<8x32xf32>, vector<8x32xf32> -> vector<8x32xf32>
    %190 = arith.addf %167, %189 : vector<8x32xf32>
    %c8 = arith.constant 8 : index
    %c0_78 = arith.constant 0 : index
    %191 = vector.load %arg4[%c8, %c0_78] : memref<16x32xf32, #tpu.memory_space<vmem>>, vector<8x32xf32>
    tpu.vector_store %arg4[%c8, %c0_78], %190 {strides = array<i32>} : memref<16x32xf32, #tpu.memory_space<vmem>>, vector<8x32xf32>,
    return
  }
}

</mosaic_0001>

<llo_original>
// kernel: tpu_custom_call.1
$region0: #{tpu_custom_call.1}
  #allocation0 [shape = 'u32[]', space=smem, size = 0x4, offset = 0x4, fixed_abs, tag = 'smem constant byte address 0x4 - core index']
  #allocation1 [shape = 'u32[72,128]{1,0:T(1,128)}', space=vmem, size = 0x9000, scoped, tag = 'internal scratch']
  %s0 = inlined_call_operand.hbm [shape: f32[16,32], index: 0, kind: input, shape index: {}]
  %s1 = inlined_call_operand.hbm [shape: f32[32,96], index: 1, kind: input, shape index: {}]
  %s2 = inlined_call_operand.hbm [shape: f32[32,32], index: 2, kind: input, shape index: {}]
  %s3 = inlined_call_operand.hbm [shape: f32[4,8,8], index: 3, kind: input, shape index: {}]
  %s4 = inlined_call_operand.hbm [shape: f32[16,32], index: 4, kind: output, shape index: {}]
  %s5 = sld [smem:[#allocation0]]
  $region42: #{tpu_custom_call.1} parent=0
    _
  %s7 = ssub.s32 1, %s5
  %s8 = scalar_select 0, %s7, %s5
  $region1: #{tpu_custom_call.1} parent=0
    #allocation2 [shape = 'u8[8192]{0}', space=vmem, size = 0x2000, scoped, tag = 'input window, operand 0, single buffered']
    #allocation3 [shape = 's32[1]{0}', space=sflag, size = 0x4, scoped, tag = 'scoped memory for tpu_custom_call.1']
    #allocation4 [shape = 's32[1]{0}', space=sflag, size = 0x4, scoped, tag = 'scoped memory for tpu_custom_call.1']
    #allocation5 [shape = 'u8[16384]{0}', space=vmem, size = 0x4000, scoped, tag = 'input window, operand 1, single buffered']
    #allocation6 [shape = 's32[1]{0}', space=sflag, size = 0x4, scoped, tag = 'scoped memory for tpu_custom_call.1']
    #allocation7 [shape = 'u8[16384]{0}', space=vmem, size = 0x4000, scoped, tag = 'input window, operand 2, single buffered']
    #allocation8 [shape = 'u8[16384]{0}', space=vmem, size = 0x4000, scoped, tag = 'input window, operand 3, single buffered']
    #allocation9 [shape = 's32[1]{0}', space=sflag, size = 0x4, scoped, tag = 'scoped memory for tpu_custom_call.1']
    #allocation10 [shape = 'u8[8192]{0}', space=vmem, size = 0x2000, scoped, tag = 'output window, operand 0, single buffered']
    %9 = vsyncpa [#allocation3], 0
    %10 = vsyncpa [#allocation6], 0
    %11 = vsyncpa [#allocation9], 0
    %12 = vsyncpa [#allocation4], 0
    // Predicated region
    $region2: #{tpu_custom_call.1} parent=1 // pred_check
      _
    $region3: #{tpu_custom_call.1} parent=1 // pred_check_branch
      %14 = sbr.rel (0) target = $region5
    $region4: #{tpu_custom_call.1} parent=1 // pred_region
      %16 = vsyncadd [#allocation3], 0
      %s17 = sshll.u32 %s0, 4
      %s18 = int_to_ptr.hbm [resolvable:$true] %s17
      %s19 = sshll.u32 [#allocation2], 4
      %s20 = int_to_ptr.vmem [resolvable:$true] %s19
      %25 = dma.hbm_to_vmem [thread:$0]  %s18, 256, %s20, [#allocation3], 128, 128, 8
    $region5: #{tpu_custom_call.1} parent=1 // pred_fallthru
      _
    // Predicated region
    $region6: #{tpu_custom_call.1} parent=1 // pred_check
      _
    $region7: #{tpu_custom_call.1} parent=1 // pred_check_branch
      %27 = sbr.rel (0) target = $region9
    $region8: #{tpu_custom_call.1} parent=1 // pred_region
      %29 = vsyncadd [#allocation6], 0
      %s30 = sshll.u32 %s1, 4
      %s31 = int_to_ptr.hbm [resolvable:$true] %s30
      %s32 = sshll.u32 [#allocation5], 4
      %s33 = int_to_ptr.vmem [resolvable:$true] %s32
      %38 = dma.hbm_to_vmem [thread:$0]  %s31, 512, %s33, [#allocation6], 128, 128, 8
    $region9: #{tpu_custom_call.1} parent=1 // pred_fallthru
      _
    // Predicated region
    $region10: #{tpu_custom_call.1} parent=1 // pred_check
      _
    $region11: #{tpu_custom_call.1} parent=1 // pred_check_branch
      %40 = sbr.rel (0) target = $region13
    $region12: #{tpu_custom_call.1} parent=1 // pred_region
      %42 = vsyncadd [#allocation6], 0
      %s43 = sshll.u32 %s2, 4
      %s44 = int_to_ptr.hbm [resolvable:$true] %s43
      %s45 = sshll.u32 [#allocation7], 4
      %s46 = int_to_ptr.vmem [resolvable:$true] %s45
      %51 = dma.hbm_to_vmem [thread:$0]  %s44, 512, %s46, [#allocation6], 128, 128, 8
    $region13: #{tpu_custom_call.1} parent=1 // pred_fallthru
      _
    // Predicated region
    $region14: #{tpu_custom_call.1} parent=1 // pred_check
      _
    $region15: #{tpu_custom_call.1} parent=1 // pred_check_branch
      %53 = sbr.rel (0) target = $region17
    $region16: #{tpu_custom_call.1} parent=1 // pred_region
      %55 = vsyncadd [#allocation9], 0
      %s56 = sshll.u32 %s3, 4
      %s57 = int_to_ptr.hbm [resolvable:$true] %s56
      %s58 = sshll.u32 [#allocation8], 4
      %s59 = int_to_ptr.vmem [resolvable:$true] %s58
      %64 = dma.hbm_to_vmem [thread:$0]  %s57, 512, %s59, [#allocation9], 128, 128, 8
    $region17: #{tpu_custom_call.1} parent=1 // pred_fallthru
      _
    // Predicated region
    $region18: #{tpu_custom_call.1} parent=1 // pred_check
      _
    $region19: #{tpu_custom_call.1} parent=1 // pred_check_branch
      %66 = sbr.rel (0) target = $region21
    $region20: #{tpu_custom_call.1} parent=1 // pred_region
      %68 = dma.done [#allocation3], 256
    $region21: #{tpu_custom_call.1} parent=1 // pred_fallthru
      _
    // Predicated region
    $region22: #{tpu_custom_call.1} parent=1 // pred_check
      _
    $region23: #{tpu_custom_call.1} parent=1 // pred_check_branch
      %70 = sbr.rel (0) target = $region25
    $region24: #{tpu_custom_call.1} parent=1 // pred_region
      %72 = dma.done [#allocation6], 512
    $region25: #{tpu_custom_call.1} parent=1 // pred_fallthru
      _
    // Predicated region
    $region26: #{tpu_custom_call.1} parent=1 // pred_check
      _
    $region27: #{tpu_custom_call.1} parent=1 // pred_check_branch
      %74 = sbr.rel (0) target = $region29
    $region28: #{tpu_custom_call.1} parent=1 // pred_region
      %76 = dma.done [#allocation6], 512
    $region29: #{tpu_custom_call.1} parent=1 // pred_fallthru
      _
    // Predicated region
    $region30: #{tpu_custom_call.1} parent=1 // pred_check
      _
    $region31: #{tpu_custom_call.1} parent=1 // pred_check_branch
      %78 = sbr.rel (0) target = $region33
    $region32: #{tpu_custom_call.1} parent=1 // pred_region
      %80 = dma.done [#allocation9], 512
    $region33: #{tpu_custom_call.1} parent=1 // pred_fallthru
      _
    %v81 = vld [vmem:[#allocation2] sm:$0xff]
    %v82 = vld [vmem:[#allocation2 + $0x8] sm:$0xff]
    %v83 = vld [vmem:[#allocation5] sm:$0xff]
    %v84 = vld [vmem:[#allocation5 + $0x8] sm:$0xff]
    %v85 = vld [vmem:[#allocation5 + $0x10] sm:$0xff]
    %v86 = vld [vmem:[#allocation5 + $0x18] sm:$0xff]
    %v87 = vld [vmem:[#allocation7] sm:$0xff]
    %v88 = vld [vmem:[#allocation7 + $0x8] sm:$0xff]
    %v89 = vld [vmem:[#allocation7 + $0x10] sm:$0xff]
    %v90 = vld [vmem:[#allocation7 + $0x18] sm:$0xff]
    %vm91 = vcmask 261120
    %v93 = vsel %vm91, %v81, 0
    %v96 = vsel %vm91, %v82, 0
    %98 = vmatpush.msra.mxu0 0.0
    %99 = vmatpush.msra.mxu0 0.0
    %100 = vmatpush.msra.mxu0 0.0
    %101 = vmatpush.msra.mxu0 0.0
    %102 = vmatpush.msra.mxu0 0.0
    %103 = vmatpush.msra.mxu0 0.0
    %104 = vmatpush.msra.mxu0 0.0
    %105 = vmatpush.msra.mxu0 0.0
    %106 = vmatpush.msra.mxu0 0.0
    %107 = vmatpush.msra.mxu0 0.0
    %108 = vmatpush.msra.mxu0 0.0
    %109 = vmatpush.msra.mxu0 0.0
    %110 = vmatpush.msra.mxu0 %v86
    %111 = vmatpush.msra.mxu0 %v85
    %112 = vmatpush.msra.mxu0 %v84
    %113 = vmatpush.msra.mxu0 %v83
    %114 = vmatmul.f32.gmra.mxu0 %v93
    %v115 = vpop.f32.mrf.mxu0
    %v116 = vadd.f32 0.0, %v115
    %117 = vmatmul.f32.gmra.mxu0 %v96
    %v118 = vpop.f32.mrf.mxu0
    %v119 = vadd.f32 0.0, %v118
    %120 = vdwg.mxu0
    %122 = vrot.lane.b32.xlu0 %v116, 96
    %v123 = vpop.permute.xlu0 %122
    %vm124 = vcmask 64512
    %v125 = vsel %vm124, %v116, 0
    %v127 = vsel %vm124, %v123, 0
    %129 = vmatpush.xpose.msra.mxu0 0.0
    %130 = vmatpush.xpose.msra.mxu0 0.0
    %131 = vmatpush.xpose.msra.mxu0 0.0
    %132 = vmatpush.xpose.msra.mxu0 0.0
    %133 = vmatpush.xpose.msra.mxu0 0.0
    %134 = vmatpush.xpose.msra.mxu0 0.0
    %135 = vmatpush.xpose.msra.mxu0 0.0
    %136 = vmatpush.xpose.msra.mxu0 0.0
    %137 = vmatpush.xpose.msra.mxu0 0.0
    %138 = vmatpush.xpose.msra.mxu0 0.0
    %139 = vmatpush.xpose.msra.mxu0 0.0
    %140 = vmatpush.xpose.msra.mxu0 0.0
    %141 = vmatpush.xpose.msra.mxu0 0.0
    %142 = vmatpush.xpose.msra.mxu0 0.0
    %143 = vmatpush.xpose.msra.mxu0 0.0
    %144 = vmatpush.xpose.msra.mxu0 %v127
    %145 = vmatmul.f32.gmra.mxu0 %v125
    %v146 = vpop.f32.mrf.mxu0
    %v147 = vadd.f32 0.0, %v146
    %148 = vdwg.mxu0
    %v149 = vmul.f32 %v147, 0.35355338
    %v150 = vsel %vm124, %v149, -inf
    %151 = vmax.xlane.f32.xlu0 %v150
    %v152 = vpop.xlane.xlu0 %151
    %v153 = vsub.f32 %v149, %v152
    %v154 = vmul.f32 %v153, 1.442695
    %v155 = vpow.pop %v154
    %v156 = vsel %vm124, %v155, 0.0
    %157 = vadd.xlane.f32.xlu0 %v156
    %v158 = vpop.xlane.xlu0 %157
    %v159 = vrcp.pop %v158
    %v160 = vmul.f32 %v155, %v159
    %v161 = vld [vmem:[#allocation8] sm:$0xff]
    %162 = vrot.lane.b32.xlu0 %v116, 64
    %v163 = vpop.permute.xlu0 %162
    %v166 = vsel %vm124, %v160, 0
    %168 = vmatpush.msra.mxu0 0.0
    %169 = vmatpush.msra.mxu0 0.0
    %170 = vmatpush.msra.mxu0 0.0
    %171 = vmatpush.msra.mxu0 0.0
    %172 = vmatpush.msra.mxu0 0.0
    %173 = vmatpush.msra.mxu0 0.0
    %174 = vmatpush.msra.mxu0 0.0
    %175 = vmatpush.msra.mxu0 0.0
    %176 = vmatpush.msra.mxu0 0.0
    %177 = vmatpush.msra.mxu0 0.0
    %178 = vmatpush.msra.mxu0 0.0
    %179 = vmatpush.msra.mxu0 0.0
    %180 = vmatpush.msra.mxu0 0.0
    %181 = vmatpush.msra.mxu0 0.0
    %182 = vmatpush.msra.mxu0 0.0
    %183 = vmatpush.msra.mxu0 %v163
    %184 = vmatmul.f32.gmra.mxu0 %v166
    %v185 = vpop.f32.mrf.mxu0
    %v186 = vadd.f32 %v161, %v185
    %187 = vdwg.mxu0
    %188 = vrot.lane.b32.xlu0 %v116, 120
    %v189 = vpop.permute.xlu0 %188
    %190 = vrot.lane.b32.xlu0 %v116, 88
    %v191 = vpop.permute.xlu0 %190
    %v192 = vsel %vm124, %v189, 0
    %v194 = vsel %vm124, %v191, 0
    %196 = vmatpush.xpose.msra.mxu0 0.0
    %197 = vmatpush.xpose.msra.mxu0 0.0
    %198 = vmatpush.xpose.msra.mxu0 0.0
    %199 = vmatpush.xpose.msra.mxu0 0.0
    %200 = vmatpush.xpose.msra.mxu0 0.0
    %201 = vmatpush.xpose.msra.mxu0 0.0
    %202 = vmatpush.xpose.msra.mxu0 0.0
    %203 = vmatpush.xpose.msra.mxu0 0.0
    %204 = vmatpush.xpose.msra.mxu0 0.0
    %205 = vmatpush.xpose.msra.mxu0 0.0
    %206 = vmatpush.xpose.msra.mxu0 0.0
    %207 = vmatpush.xpose.msra.mxu0 0.0
    %208 = vmatpush.xpose.msra.mxu0 0.0
    %209 = vmatpush.xpose.msra.mxu0 0.0
    %210 = vmatpush.xpose.msra.mxu0 0.0
    %211 = vmatpush.xpose.msra.mxu0 %v194
    %212 = vmatmul.f32.gmra.mxu0 %v192
    %v213 = vpop.f32.mrf.mxu0
    %v214 = vadd.f32 0.0, %v213
    %215 = vdwg.mxu0
    %v216 = vmul.f32 %v214, 0.35355338
    %v217 = vsel %vm124, %v216, -inf
    %218 = vmax.xlane.f32.xlu0 %v217
    %v219 = vpop.xlane.xlu0 %218
    %v220 = vsub.f32 %v216, %v219
    %v221 = vmul.f32 %v220, 1.442695
    %v222 = vpow.pop %v221
    %v223 = vsel %vm124, %v222, 0.0
    %224 = vadd.xlane.f32.xlu0 %v223
    %v225 = vpop.xlane.xlu0 %224
    %v226 = vrcp.pop %v225
    %v227 = vmul.f32 %v222, %v226
    %s228 = scalar_lea.vmem [#allocation8], 8
    %v229 = vld [vmem:[%s228] sm:$0xff]
    %230 = vrot.lane.b32.xlu0 %v116, 56
    %v231 = vpop.permute.xlu0 %230
    %v234 = vsel %vm124, %v227, 0
    %236 = vmatpush.msra.mxu0 0.0
    %237 = vmatpush.msra.mxu0 0.0
    %238 = vmatpush.msra.mxu0 0.0
    %239 = vmatpush.msra.mxu0 0.0
    %240 = vmatpush.msra.mxu0 0.0
    %241 = vmatpush.msra.mxu0 0.0
    %242 = vmatpush.msra.mxu0 0.0
    %243 = vmatpush.msra.mxu0 0.0
    %244 = vmatpush.msra.mxu0 0.0
    %245 = vmatpush.msra.mxu0 0.0
    %246 = vmatpush.msra.mxu0 0.0
    %247 = vmatpush.msra.mxu0 0.0
    %248 = vmatpush.msra.mxu0 0.0
    %249 = vmatpush.msra.mxu0 0.0
    %250 = vmatpush.msra.mxu0 0.0
    %251 = vmatpush.msra.mxu0 %v231
    %252 = vmatmul.f32.gmra.mxu0 %v234
    %v253 = vpop.f32.mrf.mxu0
    %v254 = vadd.f32 %v229, %v253
    %255 = vdwg.mxu0
    %v257 = vsel %vm124, %v254, 0
    %259 = vmatpush.msra.mxu0 0.0
    %260 = vmatpush.msra.mxu0 0.0
    %261 = vmatpush.msra.mxu0 0.0
    %262 = vmatpush.msra.mxu0 0.0
    %263 = vmatpush.msra.mxu0 0.0
    %264 = vmatpush.msra.mxu0 0.0
    %265 = vmatpush.msra.mxu0 0.0
    %266 = vmatpush.msra.mxu0 0.0
    %267 = vmatpush.msra.mxu0 0.0
    %268 = vmatpush.msra.mxu0 0.0
    %269 = vmatpush.msra.mxu0 0.0
    %270 = vmatpush.msra.mxu0 0.0
    %271 = vmatpush.msra.mxu0 0.0
    %272 = vmatpush.msra.mxu0 0.0
    %273 = vmatpush.msra.mxu0 0.0
    %274 = vmatpush.msra.mxu0 %v88
    %275 = vmatmul.f32.gmra.mxu0 %v257
    %v276 = vpop.f32.mrf.mxu0
    %v277 = vadd.f32 0.0, %v276
    %278 = vdwg.mxu0
    %v280 = vsel %vm124, %v186, 0
    %282 = vmatpush.msra.mxu0 0.0
    %283 = vmatpush.msra.mxu0 0.0
    %284 = vmatpush.msra.mxu0 0.0
    %285 = vmatpush.msra.mxu0 0.0
    %286 = vmatpush.msra.mxu0 0.0
    %287 = vmatpush.msra.mxu0 0.0
    %288 = vmatpush.msra.mxu0 0.0
    %289 = vmatpush.msra.mxu0 0.0
    %290 = vmatpush.msra.mxu0 0.0
    %291 = vmatpush.msra.mxu0 0.0
    %292 = vmatpush.msra.mxu0 0.0
    %293 = vmatpush.msra.mxu0 0.0
    %294 = vmatpush.msra.mxu0 0.0
    %295 = vmatpush.msra.mxu0 0.0
    %296 = vmatpush.msra.mxu0 0.0
    %297 = vmatpush.msra.mxu0 %v87
    %298 = vmatmul.f32.gmra.mxu0 %v280
    %v299 = vpop.f32.mrf.mxu0
    %v300 = vadd.f32 %v277, %v299
    %301 = vdwg.mxu0
    %302 = vrot.lane.b32.xlu0 %v116, 112
    %v303 = vpop.permute.xlu0 %302
    %304 = vrot.lane.b32.xlu0 %v116, 80
    %v305 = vpop.permute.xlu0 %304
    %v306 = vsel %vm124, %v303, 0
    %v308 = vsel %vm124, %v305, 0
    %310 = vmatpush.xpose.msra.mxu0 0.0
    %311 = vmatpush.xpose.msra.mxu0 0.0
    %312 = vmatpush.xpose.msra.mxu0 0.0
    %313 = vmatpush.xpose.msra.mxu0 0.0
    %314 = vmatpush.xpose.msra.mxu0 0.0
    %315 = vmatpush.xpose.msra.mxu0 0.0
    %316 = vmatpush.xpose.msra.mxu0 0.0
    %317 = vmatpush.xpose.msra.mxu0 0.0
    %318 = vmatpush.xpose.msra.mxu0 0.0
    %319 = vmatpush.xpose.msra.mxu0 0.0
    %320 = vmatpush.xpose.msra.mxu0 0.0
    %321 = vmatpush.xpose.msra.mxu0 0.0
    %322 = vmatpush.xpose.msra.mxu0 0.0
    %323 = vmatpush.xpose.msra.mxu0 0.0
    %324 = vmatpush.xpose.msra.mxu0 0.0
    %325 = vmatpush.xpose.msra.mxu0 %v308
    %326 = vmatmul.f32.gmra.mxu0 %v306
    %v327 = vpop.f32.mrf.mxu0
    %v328 = vadd.f32 0.0, %v327
    %329 = vdwg.mxu0
    %v330 = vmul.f32 %v328, 0.35355338
    %v331 = vsel %vm124, %v330, -inf
    %332 = vmax.xlane.f32.xlu0 %v331
    %v333 = vpop.xlane.xlu0 %332
    %v334 = vsub.f32 %v330, %v333
    %v335 = vmul.f32 %v334, 1.442695
    %v336 = vpow.pop %v335
    %v337 = vsel %vm124, %v336, 0.0
    %338 = vadd.xlane.f32.xlu0 %v337
    %v339 = vpop.xlane.xlu0 %338
    %v340 = vrcp.pop %v339
    %v341 = vmul.f32 %v336, %v340
    %s342 = scalar_lea.vmem [#allocation8], 16
    %v343 = vld [vmem:[%s342] sm:$0xff]
    %344 = vrot.lane.b32.xlu0 %v116, 48
    %v345 = vpop.permute.xlu0 %344
    %v348 = vsel %vm124, %v341, 0
    %350 = vmatpush.msra.mxu0 0.0
    %351 = vmatpush.msra.mxu0 0.0
    %352 = vmatpush.msra.mxu0 0.0
    %353 = vmatpush.msra.mxu0 0.0
    %354 = vmatpush.msra.mxu0 0.0
    %355 = vmatpush.msra.mxu0 0.0
    %356 = vmatpush.msra.mxu0 0.0
    %357 = vmatpush.msra.mxu0 0.0
    %358 = vmatpush.msra.mxu0 0.0
    %359 = vmatpush.msra.mxu0 0.0
    %360 = vmatpush.msra.mxu0 0.0
    %361 = vmatpush.msra.mxu0 0.0
    %362 = vmatpush.msra.mxu0 0.0
    %363 = vmatpush.msra.mxu0 0.0
    %364 = vmatpush.msra.mxu0 0.0
    %365 = vmatpush.msra.mxu0 %v345
    %366 = vmatmul.f32.gmra.mxu0 %v348
    %v367 = vpop.f32.mrf.mxu0
    %v368 = vadd.f32 %v343, %v367
    %369 = vdwg.mxu0
    %v371 = vsel %vm124, %v368, 0
    %373 = vmatpush.msra.mxu0 0.0
    %374 = vmatpush.msra.mxu0 0.0
    %375 = vmatpush.msra.mxu0 0.0
    %376 = vmatpush.msra.mxu0 0.0
    %377 = vmatpush.msra.mxu0 0.0
    %378 = vmatpush.msra.mxu0 0.0
    %379 = vmatpush.msra.mxu0 0.0
    %380 = vmatpush.msra.mxu0 0.0
    %381 = vmatpush.msra.mxu0 0.0
    %382 = vmatpush.msra.mxu0 0.0
    %383 = vmatpush.msra.mxu0 0.0
    %384 = vmatpush.msra.mxu0 0.0
    %385 = vmatpush.msra.mxu0 0.0
    %386 = vmatpush.msra.mxu0 0.0
    %387 = vmatpush.msra.mxu0 0.0
    %388 = vmatpush.msra.mxu0 %v89
    %389 = vmatmul.f32.gmra.mxu0 %v371
    %v390 = vpop.f32.mrf.mxu0
    %v391 = vadd.f32 0.0, %v390
    %392 = vdwg.mxu0
    %v393 = vadd.f32 %v300, %v391
    %394 = vrot.lane.b32.xlu0 %v116, 104
    %v395 = vpop.permute.xlu0 %394
    %396 = vrot.lane.b32.xlu0 %v116, 72
    %v397 = vpop.permute.xlu0 %396
    %v398 = vsel %vm124, %v395, 0
    %v400 = vsel %vm124, %v397, 0
    %402 = vmatpush.xpose.msra.mxu0 0.0
    %403 = vmatpush.xpose.msra.mxu0 0.0
    %404 = vmatpush.xpose.msra.mxu0 0.0
    %405 = vmatpush.xpose.msra.mxu0 0.0
    %406 = vmatpush.xpose.msra.mxu0 0.0
    %407 = vmatpush.xpose.msra.mxu0 0.0
    %408 = vmatpush.xpose.msra.mxu0 0.0
    %409 = vmatpush.xpose.msra.mxu0 0.0
    %410 = vmatpush.xpose.msra.mxu0 0.0
    %411 = vmatpush.xpose.msra.mxu0 0.0
    %412 = vmatpush.xpose.msra.mxu0 0.0
    %413 = vmatpush.xpose.msra.mxu0 0.0
    %414 = vmatpush.xpose.msra.mxu0 0.0
    %415 = vmatpush.xpose.msra.mxu0 0.0
    %416 = vmatpush.xpose.msra.mxu0 0.0
    %417 = vmatpush.xpose.msra.mxu0 %v400
    %418 = vmatmul.f32.gmra.mxu0 %v398
    %v419 = vpop.f32.mrf.mxu0
    %v420 = vadd.f32 0.0, %v419
    %421 = vdwg.mxu0
    %v422 = vmul.f32 %v420, 0.35355338
    %v423 = vsel %vm124, %v422, -inf
    %424 = vmax.xlane.f32.xlu0 %v423
    %v425 = vpop.xlane.xlu0 %424
    %v426 = vsub.f32 %v422, %v425
    %v427 = vmul.f32 %v426, 1.442695
    %v428 = vpow.pop %v427
    %v429 = vsel %vm124, %v428, 0.0
    %430 = vadd.xlane.f32.xlu0 %v429
    %v431 = vpop.xlane.xlu0 %430
    %v432 = vrcp.pop %v431
    %v433 = vmul.f32 %v428, %v432
    %s434 = scalar_lea.vmem [#allocation8], 24
    %v435 = vld [vmem:[%s434] sm:$0xff]
    %436 = vrot.lane.b32.xlu0 %v116, 40
    %v437 = vpop.permute.xlu0 %436
    %v440 = vsel %vm124, %v433, 0
    %442 = vmatpush.msra.mxu0 0.0
    %443 = vmatpush.msra.mxu0 0.0
    %444 = vmatpush.msra.mxu0 0.0
    %445 = vmatpush.msra.mxu0 0.0
    %446 = vmatpush.msra.mxu0 0.0
    %447 = vmatpush.msra.mxu0 0.0
    %448 = vmatpush.msra.mxu0 0.0
    %449 = vmatpush.msra.mxu0 0.0
    %450 = vmatpush.msra.mxu0 0.0
    %451 = vmatpush.msra.mxu0 0.0
    %452 = vmatpush.msra.mxu0 0.0
    %453 = vmatpush.msra.mxu0 0.0
    %454 = vmatpush.msra.mxu0 0.0
    %455 = vmatpush.msra.mxu0 0.0
    %456 = vmatpush.msra.mxu0 0.0
    %457 = vmatpush.msra.mxu0 %v437
    %458 = vmatmul.f32.gmra.mxu0 %v440
    %v459 = vpop.f32.mrf.mxu0
    %v460 = vadd.f32 %v435, %v459
    %461 = vdwg.mxu0
    %v463 = vsel %vm124, %v460, 0
    %465 = vmatpush.msra.mxu0 0.0
    %466 = vmatpush.msra.mxu0 0.0
    %467 = vmatpush.msra.mxu0 0.0
    %468 = vmatpush.msra.mxu0 0.0
    %469 = vmatpush.msra.mxu0 0.0
    %470 = vmatpush.msra.mxu0 0.0
    %471 = vmatpush.msra.mxu0 0.0
    %472 = vmatpush.msra.mxu0 0.0
    %473 = vmatpush.msra.mxu0 0.0
    %474 = vmatpush.msra.mxu0 0.0
    %475 = vmatpush.msra.mxu0 0.0
    %476 = vmatpush.msra.mxu0 0.0
    %477 = vmatpush.msra.mxu0 0.0
    %478 = vmatpush.msra.mxu0 0.0
    %479 = vmatpush.msra.mxu0 0.0
    %480 = vmatpush.msra.mxu0 %v90
    %481 = vmatmul.f32.gmra.mxu0 %v463
    %v482 = vpop.f32.mrf.mxu0
    %v483 = vadd.f32 0.0, %v482
    %484 = vdwg.mxu0
    %v485 = vadd.f32 %v393, %v483
    %486 = vst.msk [vmem:[#allocation10] sm:$0xff] %vm91, %v485
    %488 = vrot.lane.b32.xlu0 %v119, 96
    %v489 = vpop.permute.xlu0 %488
    %v490 = vsel %vm124, %v119, 0
    %v492 = vsel %vm124, %v489, 0
    %494 = vmatpush.xpose.msra.mxu0 0.0
    %495 = vmatpush.xpose.msra.mxu0 0.0
    %496 = vmatpush.xpose.msra.mxu0 0.0
    %497 = vmatpush.xpose.msra.mxu0 0.0
    %498 = vmatpush.xpose.msra.mxu0 0.0
    %499 = vmatpush.xpose.msra.mxu0 0.0
    %500 = vmatpush.xpose.msra.mxu0 0.0
    %501 = vmatpush.xpose.msra.mxu0 0.0
    %502 = vmatpush.xpose.msra.mxu0 0.0
    %503 = vmatpush.xpose.msra.mxu0 0.0
    %504 = vmatpush.xpose.msra.mxu0 0.0
    %505 = vmatpush.xpose.msra.mxu0 0.0
    %506 = vmatpush.xpose.msra.mxu0 0.0
    %507 = vmatpush.xpose.msra.mxu0 0.0
    %508 = vmatpush.xpose.msra.mxu0 0.0
    %509 = vmatpush.xpose.msra.mxu0 %v492
    %510 = vmatmul.f32.gmra.mxu0 %v490
    %v511 = vpop.f32.mrf.mxu0
    %v512 = vadd.f32 0.0, %v511
    %513 = vdwg.mxu0
    %v514 = vmul.f32 %v512, 0.35355338
    %v515 = vsel %vm124, %v514, -inf
    %516 = vmax.xlane.f32.xlu0 %v515
    %v517 = vpop.xlane.xlu0 %516
    %v518 = vsub.f32 %v514, %v517
    %v519 = vmul.f32 %v518, 1.442695
    %v520 = vpow.pop %v519
    %v521 = vsel %vm124, %v520, 0.0
    %522 = vadd.xlane.f32.xlu0 %v521
    %v523 = vpop.xlane.xlu0 %522
    %v524 = vrcp.pop %v523
    %v525 = vmul.f32 %v520, %v524
    %v526 = vld [vmem:[#allocation8] sm:$0xff]
    %527 = vrot.lane.b32.xlu0 %v119, 64
    %v528 = vpop.permute.xlu0 %527
    %v531 = vsel %vm124, %v525, 0
    %533 = vmatpush.msra.mxu0 0.0
    %534 = vmatpush.msra.mxu0 0.0
    %535 = vmatpush.msra.mxu0 0.0
    %536 = vmatpush.msra.mxu0 0.0
    %537 = vmatpush.msra.mxu0 0.0
    %538 = vmatpush.msra.mxu0 0.0
    %539 = vmatpush.msra.mxu0 0.0
    %540 = vmatpush.msra.mxu0 0.0
    %541 = vmatpush.msra.mxu0 0.0
    %542 = vmatpush.msra.mxu0 0.0
    %543 = vmatpush.msra.mxu0 0.0
    %544 = vmatpush.msra.mxu0 0.0
    %545 = vmatpush.msra.mxu0 0.0
    %546 = vmatpush.msra.mxu0 0.0
    %547 = vmatpush.msra.mxu0 0.0
    %548 = vmatpush.msra.mxu0 %v528
    %549 = vmatmul.f32.gmra.mxu0 %v531
    %v550 = vpop.f32.mrf.mxu0
    %v551 = vadd.f32 %v526, %v550
    %552 = vdwg.mxu0
    %553 = vrot.lane.b32.xlu0 %v119, 120
    %v554 = vpop.permute.xlu0 %553
    %555 = vrot.lane.b32.xlu0 %v119, 88
    %v556 = vpop.permute.xlu0 %555
    %v557 = vsel %vm124, %v554, 0
    %v559 = vsel %vm124, %v556, 0
    %561 = vmatpush.xpose.msra.mxu0 0.0
    %562 = vmatpush.xpose.msra.mxu0 0.0
    %563 = vmatpush.xpose.msra.mxu0 0.0
    %564 = vmatpush.xpose.msra.mxu0 0.0
    %565 = vmatpush.xpose.msra.mxu0 0.0
    %566 = vmatpush.xpose.msra.mxu0 0.0
    %567 = vmatpush.xpose.msra.mxu0 0.0
    %568 = vmatpush.xpose.msra.mxu0 0.0
    %569 = vmatpush.xpose.msra.mxu0 0.0
    %570 = vmatpush.xpose.msra.mxu0 0.0
    %571 = vmatpush.xpose.msra.mxu0 0.0
    %572 = vmatpush.xpose.msra.mxu0 0.0
    %573 = vmatpush.xpose.msra.mxu0 0.0
    %574 = vmatpush.xpose.msra.mxu0 0.0
    %575 = vmatpush.xpose.msra.mxu0 0.0
    %576 = vmatpush.xpose.msra.mxu0 %v559
    %577 = vmatmul.f32.gmra.mxu0 %v557
    %v578 = vpop.f32.mrf.mxu0
    %v579 = vadd.f32 0.0, %v578
    %580 = vdwg.mxu0
    %v581 = vmul.f32 %v579, 0.35355338
    %v582 = vsel %vm124, %v581, -inf
    %583 = vmax.xlane.f32.xlu0 %v582
    %v584 = vpop.xlane.xlu0 %583
    %v585 = vsub.f32 %v581, %v584
    %v586 = vmul.f32 %v585, 1.442695
    %v587 = vpow.pop %v586
    %v588 = vsel %vm124, %v587, 0.0
    %589 = vadd.xlane.f32.xlu0 %v588
    %v590 = vpop.xlane.xlu0 %589
    %v591 = vrcp.pop %v590
    %v592 = vmul.f32 %v587, %v591
    %v593 = vld [vmem:[%s228] sm:$0xff]
    %594 = vrot.lane.b32.xlu0 %v119, 56
    %v595 = vpop.permute.xlu0 %594
    %v598 = vsel %vm124, %v592, 0
    %600 = vmatpush.msra.mxu0 0.0
    %601 = vmatpush.msra.mxu0 0.0
    %602 = vmatpush.msra.mxu0 0.0
    %603 = vmatpush.msra.mxu0 0.0
    %604 = vmatpush.msra.mxu0 0.0
    %605 = vmatpush.msra.mxu0 0.0
    %606 = vmatpush.msra.mxu0 0.0
    %607 = vmatpush.msra.mxu0 0.0
    %608 = vmatpush.msra.mxu0 0.0
    %609 = vmatpush.msra.mxu0 0.0
    %610 = vmatpush.msra.mxu0 0.0
    %611 = vmatpush.msra.mxu0 0.0
    %612 = vmatpush.msra.mxu0 0.0
    %613 = vmatpush.msra.mxu0 0.0
    %614 = vmatpush.msra.mxu0 0.0
    %615 = vmatpush.msra.mxu0 %v595
    %616 = vmatmul.f32.gmra.mxu0 %v598
    %v617 = vpop.f32.mrf.mxu0
    %v618 = vadd.f32 %v593, %v617
    %619 = vdwg.mxu0
    %v621 = vsel %vm124, %v618, 0
    %623 = vmatpush.msra.mxu0 0.0
    %624 = vmatpush.msra.mxu0 0.0
    %625 = vmatpush.msra.mxu0 0.0
    %626 = vmatpush.msra.mxu0 0.0
    %627 = vmatpush.msra.mxu0 0.0
    %628 = vmatpush.msra.mxu0 0.0
    %629 = vmatpush.msra.mxu0 0.0
    %630 = vmatpush.msra.mxu0 0.0
    %631 = vmatpush.msra.mxu0 0.0
    %632 = vmatpush.msra.mxu0 0.0
    %633 = vmatpush.msra.mxu0 0.0
    %634 = vmatpush.msra.mxu0 0.0
    %635 = vmatpush.msra.mxu0 0.0
    %636 = vmatpush.msra.mxu0 0.0
    %637 = vmatpush.msra.mxu0 0.0
    %638 = vmatpush.msra.mxu0 %v88
    %639 = vmatmul.f32.gmra.mxu0 %v621
    %v640 = vpop.f32.mrf.mxu0
    %v641 = vadd.f32 0.0, %v640
    %642 = vdwg.mxu0
    %v644 = vsel %vm124, %v551, 0
    %646 = vmatpush.msra.mxu0 0.0
    %647 = vmatpush.msra.mxu0 0.0
    %648 = vmatpush.msra.mxu0 0.0
    %649 = vmatpush.msra.mxu0 0.0
    %650 = vmatpush.msra.mxu0 0.0
    %651 = vmatpush.msra.mxu0 0.0
    %652 = vmatpush.msra.mxu0 0.0
    %653 = vmatpush.msra.mxu0 0.0
    %654 = vmatpush.msra.mxu0 0.0
    %655 = vmatpush.msra.mxu0 0.0
    %656 = vmatpush.msra.mxu0 0.0
    %657 = vmatpush.msra.mxu0 0.0
    %658 = vmatpush.msra.mxu0 0.0
    %659 = vmatpush.msra.mxu0 0.0
    %660 = vmatpush.msra.mxu0 0.0
    %661 = vmatpush.msra.mxu0 %v87
    %662 = vmatmul.f32.gmra.mxu0 %v644
    %v663 = vpop.f32.mrf.mxu0
    %v664 = vadd.f32 %v641, %v663
    %665 = vdwg.mxu0
    %666 = vrot.lane.b32.xlu0 %v119, 112
    %v667 = vpop.permute.xlu0 %666
    %668 = vrot.lane.b32.xlu0 %v119, 80
    %v669 = vpop.permute.xlu0 %668
    %v670 = vsel %vm124, %v667, 0
    %v672 = vsel %vm124, %v669, 0
    %674 = vmatpush.xpose.msra.mxu0 0.0
    %675 = vmatpush.xpose.msra.mxu0 0.0
    %676 = vmatpush.xpose.msra.mxu0 0.0
    %677 = vmatpush.xpose.msra.mxu0 0.0
    %678 = vmatpush.xpose.msra.mxu0 0.0
    %679 = vmatpush.xpose.msra.mxu0 0.0
    %680 = vmatpush.xpose.msra.mxu0 0.0
    %681 = vmatpush.xpose.msra.mxu0 0.0
    %682 = vmatpush.xpose.msra.mxu0 0.0
    %683 = vmatpush.xpose.msra.mxu0 0.0
    %684 = vmatpush.xpose.msra.mxu0 0.0
    %685 = vmatpush.xpose.msra.mxu0 0.0
    %686 = vmatpush.xpose.msra.mxu0 0.0
    %687 = vmatpush.xpose.msra.mxu0 0.0
    %688 = vmatpush.xpose.msra.mxu0 0.0
    %689 = vmatpush.xpose.msra.mxu0 %v672
    %690 = vmatmul.f32.gmra.mxu0 %v670
    %v691 = vpop.f32.mrf.mxu0
    %v692 = vadd.f32 0.0, %v691
    %693 = vdwg.mxu0
    %v694 = vmul.f32 %v692, 0.35355338
    %v695 = vsel %vm124, %v694, -inf
    %696 = vmax.xlane.f32.xlu0 %v695
    %v697 = vpop.xlane.xlu0 %696
    %v698 = vsub.f32 %v694, %v697
    %v699 = vmul.f32 %v698, 1.442695
    %v700 = vpow.pop %v699
    %v701 = vsel %vm124, %v700, 0.0
    %702 = vadd.xlane.f32.xlu0 %v701
    %v703 = vpop.xlane.xlu0 %702
    %v704 = vrcp.pop %v703
    %v705 = vmul.f32 %v700, %v704
    %v706 = vld [vmem:[%s342] sm:$0xff]
    %707 = vrot.lane.b32.xlu0 %v119, 48
    %v708 = vpop.permute.xlu0 %707
    %v711 = vsel %vm124, %v705, 0
    %713 = vmatpush.msra.mxu0 0.0
    %714 = vmatpush.msra.mxu0 0.0
    %715 = vmatpush.msra.mxu0 0.0
    %716 = vmatpush.msra.mxu0 0.0
    %717 = vmatpush.msra.mxu0 0.0
    %718 = vmatpush.msra.mxu0 0.0
    %719 = vmatpush.msra.mxu0 0.0
    %720 = vmatpush.msra.mxu0 0.0
    %721 = vmatpush.msra.mxu0 0.0
    %722 = vmatpush.msra.mxu0 0.0
    %723 = vmatpush.msra.mxu0 0.0
    %724 = vmatpush.msra.mxu0 0.0
    %725 = vmatpush.msra.mxu0 0.0
    %726 = vmatpush.msra.mxu0 0.0
    %727 = vmatpush.msra.mxu0 0.0
    %728 = vmatpush.msra.mxu0 %v708
    %729 = vmatmul.f32.gmra.mxu0 %v711
    %v730 = vpop.f32.mrf.mxu0
    %v731 = vadd.f32 %v706, %v730
    %732 = vdwg.mxu0
    %v734 = vsel %vm124, %v731, 0
    %736 = vmatpush.msra.mxu0 0.0
    %737 = vmatpush.msra.mxu0 0.0
    %738 = vmatpush.msra.mxu0 0.0
    %739 = vmatpush.msra.mxu0 0.0
    %740 = vmatpush.msra.mxu0 0.0
    %741 = vmatpush.msra.mxu0 0.0
    %742 = vmatpush.msra.mxu0 0.0
    %743 = vmatpush.msra.mxu0 0.0
    %744 = vmatpush.msra.mxu0 0.0
    %745 = vmatpush.msra.mxu0 0.0
    %746 = vmatpush.msra.mxu0 0.0
    %747 = vmatpush.msra.mxu0 0.0
    %748 = vmatpush.msra.mxu0 0.0
    %749 = vmatpush.msra.mxu0 0.0
    %750 = vmatpush.msra.mxu0 0.0
    %751 = vmatpush.msra.mxu0 %v89
    %752 = vmatmul.f32.gmra.mxu0 %v734
    %v753 = vpop.f32.mrf.mxu0
    %v754 = vadd.f32 0.0, %v753
    %755 = vdwg.mxu0
    %v756 = vadd.f32 %v664, %v754
    %757 = vrot.lane.b32.xlu0 %v119, 104
    %v758 = vpop.permute.xlu0 %757
    %759 = vrot.lane.b32.xlu0 %v119, 72
    %v760 = vpop.permute.xlu0 %759
    %v761 = vsel %vm124, %v758, 0
    %v763 = vsel %vm124, %v760, 0
    %765 = vmatpush.xpose.msra.mxu0 0.0
    %766 = vmatpush.xpose.msra.mxu0 0.0
    %767 = vmatpush.xpose.msra.mxu0 0.0
    %768 = vmatpush.xpose.msra.mxu0 0.0
    %769 = vmatpush.xpose.msra.mxu0 0.0
    %770 = vmatpush.xpose.msra.mxu0 0.0
    %771 = vmatpush.xpose.msra.mxu0 0.0
    %772 = vmatpush.xpose.msra.mxu0 0.0
    %773 = vmatpush.xpose.msra.mxu0 0.0
    %774 = vmatpush.xpose.msra.mxu0 0.0
    %775 = vmatpush.xpose.msra.mxu0 0.0
    %776 = vmatpush.xpose.msra.mxu0 0.0
    %777 = vmatpush.xpose.msra.mxu0 0.0
    %778 = vmatpush.xpose.msra.mxu0 0.0
    %779 = vmatpush.xpose.msra.mxu0 0.0
    %780 = vmatpush.xpose.msra.mxu0 %v763
    %781 = vmatmul.f32.gmra.mxu0 %v761
    %v782 = vpop.f32.mrf.mxu0
    %v783 = vadd.f32 0.0, %v782
    %784 = vdwg.mxu0
    %v785 = vmul.f32 %v783, 0.35355338
    %v786 = vsel %vm124, %v785, -inf
    %787 = vmax.xlane.f32.xlu0 %v786
    %v788 = vpop.xlane.xlu0 %787
    %v789 = vsub.f32 %v785, %v788
    %v790 = vmul.f32 %v789, 1.442695
    %v791 = vpow.pop %v790
    %v792 = vsel %vm124, %v791, 0.0
    %793 = vadd.xlane.f32.xlu0 %v792
    %v794 = vpop.xlane.xlu0 %793
    %v795 = vrcp.pop %v794
    %v796 = vmul.f32 %v791, %v795
    %v797 = vld [vmem:[%s434] sm:$0xff]
    %798 = vrot.lane.b32.xlu0 %v119, 40
    %v799 = vpop.permute.xlu0 %798
    %v802 = vsel %vm124, %v796, 0
    %804 = vmatpush.msra.mxu0 0.0
    %805 = vmatpush.msra.mxu0 0.0
    %806 = vmatpush.msra.mxu0 0.0
    %807 = vmatpush.msra.mxu0 0.0
    %808 = vmatpush.msra.mxu0 0.0
    %809 = vmatpush.msra.mxu0 0.0
    %810 = vmatpush.msra.mxu0 0.0
    %811 = vmatpush.msra.mxu0 0.0
    %812 = vmatpush.msra.mxu0 0.0
    %813 = vmatpush.msra.mxu0 0.0
    %814 = vmatpush.msra.mxu0 0.0
    %815 = vmatpush.msra.mxu0 0.0
    %816 = vmatpush.msra.mxu0 0.0
    %817 = vmatpush.msra.mxu0 0.0
    %818 = vmatpush.msra.mxu0 0.0
    %819 = vmatpush.msra.mxu0 %v799
    %820 = vmatmul.f32.gmra.mxu0 %v802
    %v821 = vpop.f32.mrf.mxu0
    %v822 = vadd.f32 %v797, %v821
    %823 = vdwg.mxu0
    %v825 = vsel %vm124, %v822, 0
    %827 = vmatpush.msra.mxu0 0.0
    %828 = vmatpush.msra.mxu0 0.0
    %829 = vmatpush.msra.mxu0 0.0
    %830 = vmatpush.msra.mxu0 0.0
    %831 = vmatpush.msra.mxu0 0.0
    %832 = vmatpush.msra.mxu0 0.0
    %833 = vmatpush.msra.mxu0 0.0
    %834 = vmatpush.msra.mxu0 0.0
    %835 = vmatpush.msra.mxu0 0.0
    %836 = vmatpush.msra.mxu0 0.0
    %837 = vmatpush.msra.mxu0 0.0
    %838 = vmatpush.msra.mxu0 0.0
    %839 = vmatpush.msra.mxu0 0.0
    %840 = vmatpush.msra.mxu0 0.0
    %841 = vmatpush.msra.mxu0 0.0
    %842 = vmatpush.msra.mxu0 %v90
    %843 = vmatmul.f32.gmra.mxu0 %v825
    %v844 = vpop.f32.mrf.mxu0
    %v845 = vadd.f32 0.0, %v844
    %846 = vdwg.mxu0
    %v847 = vadd.f32 %v756, %v845
    %848 = vst.msk [vmem:[#allocation10 + $0x8] sm:$0xff] %vm91, %v847
    // Predicated region
    $region34: #{tpu_custom_call.1} parent=1 // pred_check
      _
    $region35: #{tpu_custom_call.1} parent=1 // pred_check_branch
      %850 = sbr.rel (0) target = $region37
    $region36: #{tpu_custom_call.1} parent=1 // pred_region
      %852 = vsyncadd [#allocation4], 0
      %s853 = sshll.u32 [#allocation10], 4
      %s854 = int_to_ptr.vmem [resolvable:$true] %s853
      %s855 = sshll.u32 %s4, 4
      %s856 = int_to_ptr.hbm [resolvable:$true] %s855
      %861 = dma.vmem_to_hbm [thread:$0]  %s854, 256, %s856, [#allocation4], 128, 128, 8
    $region37: #{tpu_custom_call.1} parent=1 // pred_fallthru
      _
    // Predicated region
    $region38: #{tpu_custom_call.1} parent=1 // pred_check
      _
    $region39: #{tpu_custom_call.1} parent=1 // pred_check_branch
      %863 = sbr.rel (0) target = $region41
    $region40: #{tpu_custom_call.1} parent=1 // pred_region
      %865 = dma.done [#allocation4], 256
    $region41: #{tpu_custom_call.1} parent=1 // pred_fallthru
      _
    %866 = vsyncpa [#allocation3], 1
    %867 = vsyncpa [#allocation6], 1
    %868 = vsyncpa [#allocation9], 1
    %869 = vsyncpa [#allocation4], 1

</llo_original>
